<compile_context>
chip_gen: v7x
topology: tpu7x:2x2x1
jax: 0.10.0
libtpu: 0.0.40
codegen_flags: <defaults>
</compile_context>

<pallas_src>
import functools
import math

import jax
import jax.numpy as jnp
from jax.experimental import pallas as pl
from jax.experimental.pallas import tpu as pltpu


_LANE = 128        # lane width (last dim)
_SUBLANE = 8       # sublane width (second-to-last dim)
_TM_CANDIDATES = (2048, 1024, 512, 256, 128, 64, 32, 16, 8)


def _round_up(a, b):
    return -(-a // b) * b


def _vmem_budgets():
    """Generation-aware (per-step budget, scoped vmem_limit_bytes)."""
    cap = 64 * 1024 * 1024
    try:
        cap = int(getattr(pltpu.get_tpu_info(), "vmem_capacity_bytes", cap))
    except Exception:
        pass
    cap = max(cap, 32 * 1024 * 1024)
    budget = (cap * 5) // 8      # ~80 MiB on 128 MiB VMEM, ~40 MiB on v7x
    limit = (cap * 3) // 4       # ~96 MiB on 128 MiB VMEM, ~48 MiB on v7x
    return budget, limit


def _pwff_kernel(x_ref, w1_ref, w2_ref, o_ref, acc_ref, *, alpha):
    """One (TM, d_in) row tile against one d_hid chunk of both weights."""
    k = pl.program_id(1)

    @pl.when(k == 0)
    def _():
        acc_ref[...] = jnp.zeros_like(acc_ref)

    cdt = w1_ref.dtype
    x = x_ref[...].astype(cdt)                       # in-kernel cast (no extra XLA pass)
    # (TM, d_in) @ (d_in, tile_hid) on the MXU, f32 accumulation.
    h = jnp.dot(x, w1_ref[...], preferred_element_type=jnp.float32)
    h = jnp.where(h >= 0, h, alpha * h)              # LeakyReLU in f32
    # (TM, tile_hid) @ (tile_hid, d_out) accumulated over d_hid chunks.
    acc_ref[...] += jnp.dot(h.astype(cdt), w2_ref[...],
                            preferred_element_type=jnp.float32)

    @pl.when(k == pl.num_programs(1) - 1)
    def _():
        o = acc_ref[...]
        o_ref[...] = jnp.where(o >= 0, o, alpha * o).astype(o_ref.dtype)
    # TODO(synk): optionally chunk the row dim inside the body (fori_loop over
    # 256-row sub-tiles) to shrink the f32 `h` scratch further on v7x.


def _choose_hid_tile(d_in_p, d_hid_p, d_out_p, c_item, weight_budget,
                     resident_buf):
    """Largest d_hid chunk (multiple of 128 dividing d_hid_p) whose weight
    slab fits the weight budget.  Returns (tile_hid, grid_k)."""
    full_bytes = (d_in_p + d_out_p) * d_hid_p * c_item
    if full_bytes * resident_buf <= weight_budget:
        return d_hid_p, 1                        # fully VMEM-resident weights
    n = d_hid_p // _LANE
    for chunks in range(2, n + 1):
        if n % chunks:
            continue
        tile_hid = (n // chunks) * _LANE
        chunk_bytes = (d_in_p + d_out_p) * tile_hid * c_item
        if 2 * chunk_bytes <= weight_budget:     # streamed chunks: 2 buffers
            return tile_hid, chunks
    return _LANE, n


def _choose_tile_m(m_base, d_in_p, tile_hid, d_out_p, x_item, c_item, o_item,
                   weight_bytes, budget):
    per_row = (
        2 * d_in_p * x_item          # x tile (double-buffered, original dtype)
        + d_in_p * c_item            # in-kernel compute-dtype copy of x
        + 2 * d_out_p * o_item       # out tile (double-buffered, output dtype)
        + d_out_p * 4                # f32 accumulator scratch
        + d_out_p * 4                # f32 activation before final cast/store
        + tile_hid * (4 + c_item)    # f32 h + compute-dtype copy of h
    )
    for tm in _TM_CANDIDATES:
        if tm > m_base:
            continue
        if weight_bytes + tm * per_row <= budget:
            return tm
    return _SUBLANE


def prepare_pwff_params(w1, w2, dtype=jnp.bfloat16, align=_LANE):
    """One-time parameter prep (call at init, not per forward).

    w1 : (d_hid, d_in)  == nn.Linear(d_in, d_hid).weight
    w2 : (d_out, d_hid) == nn.Linear(d_hid, d_out).weight

    Weights are transposed to contraction-major layout, cast to `dtype`
    (bf16 by default -> native MXU rate on all generations; pass
    dtype=jnp.float32 for exact f32 numerics) and zero-padded so every
    feature dim is a multiple of `align` (lane-dense MXU passes + unmasked
    stores).  Use align=256 on v6e/v7x when feature dims are small/odd
    (their MXUs are 2x256x256).
    """
    d_hid, d_in = w1.shape
    d_out = w2.shape[0]
    dtype = dtype or w1.dtype
    align = max(align, _LANE)
    d_in_p = _round_up(d_in, align)
    d_hid_p = _round_up(d_hid, align)
    d_out_p = _round_up(d_out, align)
    w1_t = jnp.zeros((d_in_p, d_hid_p), dtype).at[:d_in, :d_hid].set(
        w1.T.astype(dtype))
    w2_t = jnp.zeros((d_hid_p, d_out_p), dtype).at[:d_hid, :d_out].set(
        w2.T.astype(dtype))
    return w1_t, w2_t, (d_in, d_hid, d_out)


def _pwff_call(x2d, w1_t, w2_t, out_dtype, alpha, tile_m_req,
               single_buffer_weights, budget, vmem_limit):
    M, d_in = x2d.shape
    d_in_p, d_hid_p = w1_t.shape
    d_out_p = w2_t.shape[1]
    compute_dtype = w1_t.dtype
    x_item = jnp.dtype(x2d.dtype).itemsize
    c_item = jnp.dtype(compute_dtype).itemsize
    o_item = jnp.dtype(out_dtype).itemsize

    m_base = _round_up(max(M, 1), _SUBLANE)

    # --- hidden-dim split (grid_k > 1 only when the weights can't stay resident)
    resident_buf = 1 if single_buffer_weights else 2
    tile_hid, grid_k = _choose_hid_tile(
        d_in_p, d_hid_p, d_out_p, c_item, budget // 2, resident_buf)
    weight_buf = resident_buf if grid_k == 1 else 2
    weight_bytes = (d_in_p + d_out_p) * tile_hid * c_item * weight_buf

    # --- row tile
    if tile_m_req is None:
        tile_m = _choose_tile_m(m_base, d_in_p, tile_hid, d_out_p,
                                x_item, c_item, o_item, weight_bytes, budget)
    else:
        tile_m = min(_round_up(tile_m_req, _SUBLANE), m_base)
    # Keep at least two row tiles so the "parallel" axis can be split across
    # v7x's two TensorCores.
    if m_base >= 2 * _SUBLANE:
        tile_m = min(tile_m, max(_SUBLANE, (m_base // 2) // _SUBLANE * _SUBLANE))
    # Prefer a nearby tile that divides m_base: avoids the wrapper-side
    # jnp.pad / output-slice passes due to rounding M up to the tile.
    if m_base % tile_m:
        t = tile_m - _SUBLANE
        while t >= max(_SUBLANE, tile_m // 2):
            if m_base % t == 0:
                tile_m = t
                break
            t -= _SUBLANE

    m_padded = _round_up(m_base, tile_m)
    grid_m = m_padded // tile_m

    if (m_padded, d_in_p) != (M, d_in):
        # Zero padding is exact for this op (LeakyReLU(0) == 0).
        x2d = jnp.pad(x2d, ((0, m_padded - M), (0, d_in_p - d_in)))

    # --- block specs
    if grid_k == 1 and single_buffer_weights:
        # Constant block index: single VMEM buffer is enough.
        w1_spec = pl.BlockSpec((d_in_p, tile_hid), lambda i, k: (0, k),
                               pipeline_mode=pl.Buffered(1))
        w2_spec = pl.BlockSpec((tile_hid, d_out_p), lambda i, k: (k, 0),
                               pipeline_mode=pl.Buffered(1))
    else:
        w1_spec = pl.BlockSpec((d_in_p, tile_hid), lambda i, k: (0, k))
        w2_spec = pl.BlockSpec((tile_hid, d_out_p), lambda i, k: (k, 0))

    weight_reads = 1 if grid_k == 1 else grid_m
    flops = 2 * m_padded * (d_in_p * d_hid_p + d_hid_p * d_out_p)
    bytes_accessed = (
        x_item * m_padded * d_in_p
        + c_item * weight_reads * (d_in_p * d_hid_p + d_hid_p * d_out_p)
        + o_item * m_padded * d_out_p
    )

    out2d = pl.pallas_call(
        functools.partial(_pwff_kernel, alpha=alpha),
        out_shape=jax.ShapeDtypeStruct((m_padded, d_out_p), out_dtype),
        grid_spec=pltpu.PrefetchScalarGridSpec(
            num_scalar_prefetch=0,
            grid=(grid_m, grid_k),
            in_specs=[
                pl.BlockSpec((tile_m, d_in_p), lambda i, k: (i, 0)),
                w1_spec,
                w2_spec,
            ],
            out_specs=pl.BlockSpec((tile_m, d_out_p), lambda i, k: (i, 0)),
            scratch_shapes=[pltpu.VMEM((tile_m, d_out_p), jnp.float32)],
        ),
        compiler_params=pltpu.CompilerParams(
            dimension_semantics=("parallel", "arbitrary"),
            vmem_limit_bytes=vmem_limit,
        ),
        cost_estimate=pl.CostEstimate(
            flops=flops, transcendentals=0, bytes_accessed=bytes_accessed),
    )(x2d, w1_t, w2_t)
    return out2d


def position_wise_feed_forward(x, w1_t, w2_t, d_out, alpha=0.2, tile_m=None):
    """
    x     : (..., d_in)          activations (any float dtype)
    w1_t  : (d_in_p, d_hid_p)    from prepare_pwff_params
    w2_t  : (d_hid_p, d_out_p)   from prepare_pwff_params
    d_out : true (unpadded) output feature dim
    returns (..., d_out) in x.dtype
    """
    orig_shape = x.shape
    d_in = orig_shape[-1]
    M = math.prod(orig_shape[:-1])
    x2d = x.reshape(M, d_in)

    budget, vmem_limit = _vmem_budgets()

    out2d, last_err = None, None
    for single_buffer_weights in (True, False):
        try:
            out2d = _pwff_call(x2d, w1_t, w2_t, x.dtype, alpha, tile_m,
                               single_buffer_weights, budget, vmem_limit)
            break
        except Exception as err:   # fall back to default double buffering
            last_err = err
    if out2d is None:
        raise last_err

    if out2d.shape != (M, d_out):
        out2d = out2d[:M, :d_out]
    return out2d.reshape(*orig_shape[:-1], d_out)


def xavier_normal(key, shape, gain):
    # PyTorch xavier_normal_ for a (fan_out, fan_in) Linear weight:
    # std = gain * sqrt(2 / (fan_in + fan_out))
    fan_out, fan_in = shape
    std = gain * math.sqrt(2.0 / (fan_in + fan_out))
    return std * jax.random.normal(key, shape, dtype=jnp.float32)


if __name__ == "__main__":
    # Small shapes consistent with the module.
    B, S = 2, 8
    d_in, d_hid, d_out = 32, 64, 32
    alpha = 0.2
    gain = 1.414

    key = jax.random.PRNGKey(0)
    kx, k1, k2 = jax.random.split(key, 3)

    x = jax.random.normal(kx, (B, S, d_in), dtype=jnp.float32)
    w1 = xavier_normal(k1, (d_hid, d_in), gain)   # nn.Linear(d_in, d_hid).weight
    w2 = xavier_normal(k2, (d_out, d_hid), gain)  # nn.Linear(d_hid, d_out).weight

    # One-time parameter prep: bf16 by default (native MXU rate, f32 accum);
    # pass dtype=jnp.float32 for bit-faithful f32 numerics.
    w1_t, w2_t, dims = prepare_pwff_params(w1, w2)
    out = position_wise_feed_forward(x, w1_t, w2_t, d_out=dims[2], alpha=alpha)
    out = jax.block_until_ready(out)

    def leaky(v):
        return jnp.where(v >= 0, v, alpha * v)

    # Reference mirroring the kernel's bf16-compute / f32-accumulate math.
    cdt = w1_t.dtype
    h_ref = leaky(jnp.dot(x.astype(cdt), w1.T.astype(cdt),
                          preferred_element_type=jnp.float32))
    ref = leaky(jnp.dot(h_ref.astype(cdt), w2.T.astype(cdt),
                        preferred_element_type=jnp.float32))
    # Full-f32 PyTorch-style reference (bf16 compute is an accepted tradeoff).
    ref_f32 = leaky(leaky(x @ w1.T) @ w2.T)

    assert out.shape == (B, S, d_out)
    assert jnp.allclose(out, ref, atol=2e-2, rtol=2e-2), float(
        jnp.max(jnp.abs(out - ref)))
    assert jnp.allclose(out, ref_f32, atol=1e-1, rtol=1e-1)

    print("KERNEL_OK")
</pallas_src>

<mosaic_0001>
module attributes {stable_mosaic.version = 11 : i64} {
  func.func @_pwff_kernel(%arg0: i32, %arg1: i32, %arg2: memref<8x128xf32, #tpu.memory_space<vmem>>, %arg3: memref<128x128xbf16, #tpu.memory_space<vmem>>, %arg4: memref<128x128xbf16, #tpu.memory_space<vmem>>, %arg5: memref<8x128xf32, #tpu.memory_space<vmem>>, %arg6: memref<8x128xf32, #tpu.memory_space<vmem>>) attributes {dimension_semantics = [#tpu.dimension_semantics<parallel>, #tpu.dimension_semantics<arbitrary>], iteration_bounds = array<i64: 2, 1>, scalar_prefetch = 0 : i64, scratch_operands = 1 : i64, tpu.core_type = #tpu.core_type<tc>, window_params = [{transform_indices = @transform_0, window_bounds = array<i64: 8, 128>}, {pipeline_mode = #tpu.pipeline_mode<synchronous>, transform_indices = @transform_1, window_bounds = array<i64: 128, 128>}, {pipeline_mode = #tpu.pipeline_mode<synchronous>, transform_indices = @transform_2, window_bounds = array<i64: 128, 128>}, {transform_indices = @transform_3, window_bounds = array<i64: 8, 128>}]} {
    %c0_i32 = arith.constant 0 : i32
    %0 = arith.cmpi eq, %arg1, %c0_i32 : i32
    %1 = arith.extui %0 : i1 to i32
    %c0_i32_0 = arith.constant 0 : i32
    %2 = arith.cmpi ne, %1, %c0_i32_0 : i32
    scf.if %2 {
      %cst_15 = arith.constant 0.000000e+00 : f32
      %21 = vector.broadcast %cst_15 : f32 to vector<8x128xf32>
      %c0_16 = arith.constant 0 : index
      %c0_17 = arith.constant 0 : index
      %22 = vector.load %arg6[%c0_16, %c0_17] : memref<8x128xf32, #tpu.memory_space<vmem>>, vector<8x128xf32>
      tpu.vector_store %arg6[%c0_16, %c0_17], %21 {strides = array<i32>} : memref<8x128xf32, #tpu.memory_space<vmem>>, vector<8x128xf32>,
    } else {
    }
    %c0 = arith.constant 0 : index
    %c0_1 = arith.constant 0 : index
    %3 = vector.load %arg2[%c0, %c0_1] : memref<8x128xf32, #tpu.memory_space<vmem>>, vector<8x128xf32>
    %4 = arith.truncf %3 : vector<8x128xf32> to vector<8x128xbf16>
    %c0_2 = arith.constant 0 : index
    %c0_3 = arith.constant 0 : index
    %5 = vector.load %arg3[%c0_2, %c0_3] : memref<128x128xbf16, #tpu.memory_space<vmem>>, vector<128x128xbf16>
    %cst = arith.constant dense<0.000000e+00> : vector<8x128xf32>
    %6 = tpu.matmul %4, %5, %cst {dimension_numbers = #tpu.dot_dimension_numbers<[1], [0], [0], [1], [0, 0, 1, 1], [], []>} : vector<8x128xbf16>, vector<128x128xbf16>, vector<8x128xf32> -> vector<8x128xf32>
    %cst_4 = arith.constant 0.000000e+00 : f32
    %7 = vector.broadcast %cst_4 : f32 to vector<8x128xf32>
    %8 = arith.cmpf oge, %6, %7 : vector<8x128xf32>
    %cst_5 = arith.constant 2.000000e-01 : f32
    %9 = vector.broadcast %cst_5 : f32 to vector<8x128xf32>
    %10 = arith.mulf %9, %6 : vector<8x128xf32>
    %11 = arith.select %8, %6, %10 : vector<8x128xi1>, vector<8x128xf32>
    %c0_6 = arith.constant 0 : index
    %c0_7 = arith.constant 0 : index
    %12 = vector.load %arg6[%c0_6, %c0_7] : memref<8x128xf32, #tpu.memory_space<vmem>>, vector<8x128xf32>
    %13 = arith.truncf %11 : vector<8x128xf32> to vector<8x128xbf16>
    %c0_8 = arith.constant 0 : index
    %c0_9 = arith.constant 0 : index
    %14 = vector.load %arg4[%c0_8, %c0_9] : memref<128x128xbf16, #tpu.memory_space<vmem>>, vector<128x128xbf16>
    %cst_10 = arith.constant dense<0.000000e+00> : vector<8x128xf32>
    %15 = tpu.matmul %13, %14, %cst_10 {dimension_numbers = #tpu.dot_dimension_numbers<[1], [0], [0], [1], [0, 0, 1, 1], [], []>} : vector<8x128xbf16>, vector<128x128xbf16>, vector<8x128xf32> -> vector<8x128xf32>
    %16 = arith.addf %12, %15 : vector<8x128xf32>
    %c0_11 = arith.constant 0 : index
    %c0_12 = arith.constant 0 : index
    %17 = vector.load %arg6[%c0_11, %c0_12] : memref<8x128xf32, #tpu.memory_space<vmem>>, vector<8x128xf32>
    tpu.vector_store %arg6[%c0_11, %c0_12], %16 {strides = array<i32>} : memref<8x128xf32, #tpu.memory_space<vmem>>, vector<8x128xf32>,
    %c0_i32_13 = arith.constant 0 : i32
    %18 = arith.cmpi eq, %arg1, %c0_i32_13 : i32
    %19 = arith.extui %18 : i1 to i32
    %c0_i32_14 = arith.constant 0 : i32
    %20 = arith.cmpi ne, %19, %c0_i32_14 : i32
    scf.if %20 {
      %c0_15 = arith.constant 0 : index
      %c0_16 = arith.constant 0 : index
      %21 = vector.load %arg6[%c0_15, %c0_16] : memref<8x128xf32, #tpu.memory_space<vmem>>, vector<8x128xf32>
      %cst_17 = arith.constant 0.000000e+00 : f32
      %22 = vector.broadcast %cst_17 : f32 to vector<8x128xf32>
      %23 = arith.cmpf oge, %21, %22 : vector<8x128xf32>
      %cst_18 = arith.constant 2.000000e-01 : f32
      %24 = vector.broadcast %cst_18 : f32 to vector<8x128xf32>
      %25 = arith.mulf %24, %21 : vector<8x128xf32>
      %26 = arith.select %23, %21, %25 : vector<8x128xi1>, vector<8x128xf32>
      %c0_19 = arith.constant 0 : index
      %c0_20 = arith.constant 0 : index
      %27 = vector.load %arg5[%c0_19, %c0_20] : memref<8x128xf32, #tpu.memory_space<vmem>>, vector<8x128xf32>
      tpu.vector_store %arg5[%c0_19, %c0_20], %26 {strides = array<i32>} : memref<8x128xf32, #tpu.memory_space<vmem>>, vector<8x128xf32>,
    } else {
    }
    return
  }
  func.func @transform_0(%arg0: i32, %arg1: i32) -> (i32, i32) {
    %c0_i32 = arith.constant 0 : i32
    %c0_i32_0 = arith.constant 0 : i32
    return %arg0, %c0_i32 : i32, i32
  }
  func.func @transform_1(%arg0: i32, %arg1: i32) -> (i32, i32) {
    %c0_i32 = arith.constant 0 : i32
    %c0_i32_0 = arith.constant 0 : i32
    return %c0_i32, %arg1 : i32, i32
  }
  func.func @transform_2(%arg0: i32, %arg1: i32) -> (i32, i32) {
    %c0_i32 = arith.constant 0 : i32
    %c0_i32_0 = arith.constant 0 : i32
    return %arg1, %c0_i32 : i32, i32
  }
  func.func @transform_3(%arg0: i32, %arg1: i32) -> (i32, i32) {
    %c0_i32 = arith.constant 0 : i32
    %c0_i32_0 = arith.constant 0 : i32
    return %arg0, %c0_i32 : i32, i32
  }
}

module attributes {stable_mosaic.version = 11 : i64} {
  func.func @_pwff_kernel(%arg0: i32, %arg1: i32, %arg2: memref<8x128xf32, #tpu.memory_space<vmem>>, %arg3: memref<128x128xbf16, #tpu.memory_space<vmem>>, %arg4: memref<128x128xbf16, #tpu.memory_space<vmem>>, %arg5: memref<8x128xf32, #tpu.memory_space<vmem>>, %arg6: memref<8x128xf32, #tpu.memory_space<vmem>>) attributes {dimension_semantics = [#tpu.dimension_semantics<parallel>, #tpu.dimension_semantics<arbitrary>], iteration_bounds = array<i64: 2, 1>, scalar_prefetch = 0 : i64, scratch_operands = 1 : i64, tpu.core_type = #tpu.core_type<tc>, window_params = [{transform_indices = @transform_0, window_bounds = array<i64: 8, 128>}, {transform_indices = @transform_1, window_bounds = array<i64: 128, 128>}, {transform_indices = @transform_2, window_bounds = array<i64: 128, 128>}, {transform_indices = @transform_3, window_bounds = array<i64: 8, 128>}]} {
    %c0_i32 = arith.constant 0 : i32
    %0 = arith.cmpi eq, %arg1, %c0_i32 : i32
    %1 = arith.extui %0 : i1 to i32
    %c0_i32_0 = arith.constant 0 : i32
    %2 = arith.cmpi ne, %1, %c0_i32_0 : i32
    scf.if %2 {
      %cst_15 = arith.constant 0.000000e+00 : f32
      %21 = vector.broadcast %cst_15 : f32 to vector<8x128xf32>
      %c0_16 = arith.constant 0 : index
      %c0_17 = arith.constant 0 : index
      %22 = vector.load %arg6[%c0_16, %c0_17] : memref<8x128xf32, #tpu.memory_space<vmem>>, vector<8x128xf32>
      tpu.vector_store %arg6[%c0_16, %c0_17], %21 {strides = array<i32>} : memref<8x128xf32, #tpu.memory_space<vmem>>, vector<8x128xf32>,
    } else {
    }
    %c0 = arith.constant 0 : index
    %c0_1 = arith.constant 0 : index
    %3 = vector.load %arg2[%c0, %c0_1] : memref<8x128xf32, #tpu.memory_space<vmem>>, vector<8x128xf32>
    %4 = arith.truncf %3 : vector<8x128xf32> to vector<8x128xbf16>
    %c0_2 = arith.constant 0 : index
    %c0_3 = arith.constant 0 : index
    %5 = vector.load %arg3[%c0_2, %c0_3] : memref<128x128xbf16, #tpu.memory_space<vmem>>, vector<128x128xbf16>
    %cst = arith.constant dense<0.000000e+00> : vector<8x128xf32>
    %6 = tpu.matmul %4, %5, %cst {dimension_numbers = #tpu.dot_dimension_numbers<[1], [0], [0], [1], [0, 0, 1, 1], [], []>} : vector<8x128xbf16>, vector<128x128xbf16>, vector<8x128xf32> -> vector<8x128xf32>
    %cst_4 = arith.constant 0.000000e+00 : f32
    %7 = vector.broadcast %cst_4 : f32 to vector<8x128xf32>
    %8 = arith.cmpf oge, %6, %7 : vector<8x128xf32>
    %cst_5 = arith.constant 2.000000e-01 : f32
    %9 = vector.broadcast %cst_5 : f32 to vector<8x128xf32>
    %10 = arith.mulf %9, %6 : vector<8x128xf32>
    %11 = arith.select %8, %6, %10 : vector<8x128xi1>, vector<8x128xf32>
    %c0_6 = arith.constant 0 : index
    %c0_7 = arith.constant 0 : index
    %12 = vector.load %arg6[%c0_6, %c0_7] : memref<8x128xf32, #tpu.memory_space<vmem>>, vector<8x128xf32>
    %13 = arith.truncf %11 : vector<8x128xf32> to vector<8x128xbf16>
    %c0_8 = arith.constant 0 : index
    %c0_9 = arith.constant 0 : index
    %14 = vector.load %arg4[%c0_8, %c0_9] : memref<128x128xbf16, #tpu.memory_space<vmem>>, vector<128x128xbf16>
    %cst_10 = arith.constant dense<0.000000e+00> : vector<8x128xf32>
    %15 = tpu.matmul %13, %14, %cst_10 {dimension_numbers = #tpu.dot_dimension_numbers<[1], [0], [0], [1], [0, 0, 1, 1], [], []>} : vector<8x128xbf16>, vector<128x128xbf16>, vector<8x128xf32> -> vector<8x128xf32>
    %16 = arith.addf %12, %15 : vector<8x128xf32>
    %c0_11 = arith.constant 0 : index
    %c0_12 = arith.constant 0 : index
    %17 = vector.load %arg6[%c0_11, %c0_12] : memref<8x128xf32, #tpu.memory_space<vmem>>, vector<8x128xf32>
    tpu.vector_store %arg6[%c0_11, %c0_12], %16 {strides = array<i32>} : memref<8x128xf32, #tpu.memory_space<vmem>>, vector<8x128xf32>,
    %c0_i32_13 = arith.constant 0 : i32
    %18 = arith.cmpi eq, %arg1, %c0_i32_13 : i32
    %19 = arith.extui %18 : i1 to i32
    %c0_i32_14 = arith.constant 0 : i32
    %20 = arith.cmpi ne, %19, %c0_i32_14 : i32
    scf.if %20 {
      %c0_15 = arith.constant 0 : index
      %c0_16 = arith.constant 0 : index
      %21 = vector.load %arg6[%c0_15, %c0_16] : memref<8x128xf32, #tpu.memory_space<vmem>>, vector<8x128xf32>
      %cst_17 = arith.constant 0.000000e+00 : f32
      %22 = vector.broadcast %cst_17 : f32 to vector<8x128xf32>
      %23 = arith.cmpf oge, %21, %22 : vector<8x128xf32>
      %cst_18 = arith.constant 2.000000e-01 : f32
      %24 = vector.broadcast %cst_18 : f32 to vector<8x128xf32>
      %25 = arith.mulf %24, %21 : vector<8x128xf32>
      %26 = arith.select %23, %21, %25 : vector<8x128xi1>, vector<8x128xf32>
      %c0_19 = arith.constant 0 : index
      %c0_20 = arith.constant 0 : index
      %27 = vector.load %arg5[%c0_19, %c0_20] : memref<8x128xf32, #tpu.memory_space<vmem>>, vector<8x128xf32>
      tpu.vector_store %arg5[%c0_19, %c0_20], %26 {strides = array<i32>} : memref<8x128xf32, #tpu.memory_space<vmem>>, vector<8x128xf32>,
    } else {
    }
    return
  }
  func.func @transform_0(%arg0: i32, %arg1: i32) -> (i32, i32) {
    %c0_i32 = arith.constant 0 : i32
    %c0_i32_0 = arith.constant 0 : i32
    return %arg0, %c0_i32 : i32, i32
  }
  func.func @transform_1(%arg0: i32, %arg1: i32) -> (i32, i32) {
    %c0_i32 = arith.constant 0 : i32
    %c0_i32_0 = arith.constant 0 : i32
    return %c0_i32, %arg1 : i32, i32
  }
  func.func @transform_2(%arg0: i32, %arg1: i32) -> (i32, i32) {
    %c0_i32 = arith.constant 0 : i32
    %c0_i32_0 = arith.constant 0 : i32
    return %arg1, %c0_i32 : i32, i32
  }
  func.func @transform_3(%arg0: i32, %arg1: i32) -> (i32, i32) {
    %c0_i32 = arith.constant 0 : i32
    %c0_i32_0 = arith.constant 0 : i32
    return %arg0, %c0_i32 : i32, i32
  }
}

</mosaic_0001>

<llo_original>
// kernel: tpu_custom_call.1
$region0: #{tpu_custom_call.1}
  #allocation0 [shape = 'u32[]', space=smem, size = 0x4, offset = 0x4, fixed_abs, tag = 'smem constant byte address 0x4 - core index']
  #allocation1 [shape = 'u32[144,128]{1,0:T(1,128)}', space=vmem, size = 0x12000, scoped, tag = 'internal scratch']
  #allocation2 [shape = 'f32[8,128]{1,0:T(8,128)}', space=vmem, size = 0x1000, scoped, tag = 'scratch operand']
  %s0 = inlined_call_operand.hbm [shape: f32[16,128], index: 0, kind: input, shape index: {}]
  %s1 = inlined_call_operand.hbm [shape: bf16[128,128], index: 1, kind: input, shape index: {}]
  %s2 = inlined_call_operand.hbm [shape: bf16[128,128], index: 2, kind: input, shape index: {}]
  %s3 = inlined_call_operand.hbm [shape: f32[16,128], index: 3, kind: output, shape index: {}]
  %s4 = sld [smem:[#allocation0]]
  $region65: #{tpu_custom_call.1} parent=0
    _
  %s6 = ssub.s32 1, %s4
  %s7 = scalar_select 0, %s6, %s4
  $region1: #{tpu_custom_call.1} parent=0
    #allocation3 [shape = 'u8[8192]{0}', space=vmem, size = 0x2000, scoped, tag = 'input window, operand 0']
    #allocation4 [shape = 's32[2]{0}', space=sflag, size = 0x8, scoped, tag = 'scoped memory for tpu_custom_call.1']
    #allocation5 [shape = 's32[2]{0}', space=sflag, size = 0x8, scoped, tag = 'scoped memory for tpu_custom_call.1']
    #allocation6 [shape = 'u8[32768]{0}', space=vmem, size = 0x8000, scoped, tag = 'input window, operand 1, single buffered']
    #allocation7 [shape = 's32[1]{0}', space=sflag, size = 0x4, scoped, tag = 'scoped memory for tpu_custom_call.1']
    #allocation8 [shape = 'u8[32768]{0}', space=vmem, size = 0x8000, scoped, tag = 'input window, operand 2, single buffered']
    #allocation9 [shape = 'u8[8192]{0}', space=vmem, size = 0x2000, scoped, tag = 'output window, operand 0']
    %8 = vsyncpa [#allocation4], 0
    %s9 = scalar_lea.sflag [#allocation4], 1
    %10 = vsyncpa %s9, 0
    %11 = vsyncpa [#allocation7], 0
    %12 = vsyncpa [#allocation5], 0
    %s13 = scalar_lea.sflag [#allocation5], 1
    %14 = vsyncpa %s13, 0
    loop: start=0, step=1, limit=4
    $region2: #{tpu_custom_call.1} parent=1 // loop_pre_header
      _
    $region3: #{tpu_custom_call.1} parent=1 // loop_header
      %s16 = sphi 0, %s20
      %p17 = scmp.ge.s32.totalorder %s16, 4
      %s23 = sphi 0, %s35
      %s24 = sphi 0, %s31
      %s25 = sphi 0, %s23
      %s26 = sphi 0, %s24
      %s27 = sphi 0, %s25
      %s28 = sphi 0, %s26
      %s38 = sphi 0, %s40
      %s41 = sphi 0, %s38
      %s42 = sphi 0, %s41
      %s58 = sphi 0, %s42
      %s64 = sphi 0, %s66
      %s67 = sphi 0, %s64
      %s68 = sphi 0, %s67
      %s84 = sphi 0, %s68
      %s90 = sphi 0, %s92
      %s93 = sphi 0, %s90
      %s94 = sphi 0, %s93
      %s110 = sphi 0, %s94
      %s116 = sphi 0, %s118
      %s119 = sphi 0, %s116
      %s120 = sphi 0, %s119
      %s136 = sphi 0, %s120
    $region4: #{tpu_custom_call.1} parent=1 // loop_header_branch
      %19 = sbr.rel (%p17) target = $region8
    $region5: #{tpu_custom_call.1} parent=1 // loop_body
      %s21 = ssub.s32 %s16, 1
      %s22 = ssub.s32 %s16, 2
      %s29 = sadd.s32 1, %s24
      %p30 = scmp.ge.s32.totalorder %s29, 1
      %s31 = scalar_select %p30, 0, %s29
      %s32 = sadd.s32 1, %s23
      %s33 = scalar_select %p30, %s32, %s23
      %p34 = scmp.ge.s32.totalorder %s33, 2
      %s35 = scalar_select %p34, 0, %s33
      %s36 = ssub.s32 %s23, %s35
      %p37 = scmp.eq.s32.totalorder %s36, 0
      %s39 = sadd.s32 %s38, 1
      %s40 = scalar_select %p37, %s38, %s39
      %p43 = pneg %p37
      %p44 = scmp.eq.s32.totalorder %s16, 1
      %p45 = por %p43, %p44
      %p46 = scmp.ne.s32.totalorder %s38, %s41
      %p47 = scmp.eq.s32.totalorder %s16, 0
      %p48 = por %p46, %p47
      %p49 = scmp.ne.s32.totalorder %s38, %s41
      %p50 = scmp.eq.s32.totalorder %s21, 1
      %p51 = por %p49, %p50
      %p52 = scmp.ne.s32.totalorder %s41, %s42
      %p53 = scmp.eq.s32.totalorder %s21, 0
      %p54 = por %p52, %p53
      %p55 = scmp.ne.s32.totalorder %s41, %s42
      %p56 = scmp.eq.s32.totalorder %s22, 1
      %p57 = por %p55, %p56
      %p59 = scmp.ne.s32.totalorder %s42, %s58
      %p60 = scmp.eq.s32.totalorder %s22, 0
      %p61 = por %p59, %p60
      %s62 = ssub.s32 %s24, %s31
      %p63 = scmp.eq.s32.totalorder %s62, 0
      %s65 = sadd.s32 %s64, 1
      %s66 = scalar_select %p63, %s64, %s65
      %p69 = pneg %p63
      %p70 = scmp.eq.s32.totalorder %s16, 1
      %p71 = por %p69, %p70
      %p72 = scmp.ne.s32.totalorder %s64, %s67
      %p73 = scmp.eq.s32.totalorder %s16, 0
      %p74 = por %p72, %p73
      %p75 = scmp.ne.s32.totalorder %s64, %s67
      %p76 = scmp.eq.s32.totalorder %s21, 1
      %p77 = por %p75, %p76
      %p78 = scmp.ne.s32.totalorder %s67, %s68
      %p79 = scmp.eq.s32.totalorder %s21, 0
      %p80 = por %p78, %p79
      %p81 = scmp.ne.s32.totalorder %s67, %s68
      %p82 = scmp.eq.s32.totalorder %s22, 1
      %p83 = por %p81, %p82
      %p85 = scmp.ne.s32.totalorder %s68, %s84
      %p86 = scmp.eq.s32.totalorder %s22, 0
      %p87 = por %p85, %p86
      %s88 = ssub.s32 %s24, %s31
      %p89 = scmp.eq.s32.totalorder %s88, 0
      %s91 = sadd.s32 %s90, 1
      %s92 = scalar_select %p89, %s90, %s91
      %p95 = pneg %p89
      %p96 = scmp.eq.s32.totalorder %s16, 1
      %p97 = por %p95, %p96
      %p98 = scmp.ne.s32.totalorder %s90, %s93
      %p99 = scmp.eq.s32.totalorder %s16, 0
      %p100 = por %p98, %p99
      %p101 = scmp.ne.s32.totalorder %s90, %s93
      %p102 = scmp.eq.s32.totalorder %s21, 1
      %p103 = por %p101, %p102
      %p104 = scmp.ne.s32.totalorder %s93, %s94
      %p105 = scmp.eq.s32.totalorder %s21, 0
      %p106 = por %p104, %p105
      %p107 = scmp.ne.s32.totalorder %s93, %s94
      %p108 = scmp.eq.s32.totalorder %s22, 1
      %p109 = por %p107, %p108
      %p111 = scmp.ne.s32.totalorder %s94, %s110
      %p112 = scmp.eq.s32.totalorder %s22, 0
      %p113 = por %p111, %p112
      %s114 = ssub.s32 %s23, %s35
      %p115 = scmp.eq.s32.totalorder %s114, 0
      %s117 = sadd.s32 %s116, 1
      %s118 = scalar_select %p115, %s116, %s117
      %p121 = pneg %p115
      %p122 = scmp.eq.s32.totalorder %s16, 1
      %p123 = por %p121, %p122
      %p124 = scmp.ne.s32.totalorder %s116, %s119
      %p125 = scmp.eq.s32.totalorder %s16, 0
      %p126 = por %p124, %p125
      %p127 = scmp.ne.s32.totalorder %s116, %s119
      %p128 = scmp.eq.s32.totalorder %s21, 1
      %p129 = por %p127, %p128
      %p130 = scmp.ne.s32.totalorder %s119, %s120
      %p131 = scmp.eq.s32.totalorder %s21, 0
      %p132 = por %p130, %p131
      %p133 = scmp.ne.s32.totalorder %s119, %s120
      %p134 = scmp.eq.s32.totalorder %s22, 1
      %p135 = por %p133, %p134
      %p137 = scmp.ne.s32.totalorder %s120, %s136
      %p138 = scmp.eq.s32.totalorder %s22, 0
      %p139 = por %p137, %p138
      %p140 = scmp.le.s32.totalorder 1, %s16
      %p141 = scmp.lt.s32.totalorder %s16, 3
      %p142 = pnand %p140, %p141
      %p143 = pneg %p142
      // Predicated region
      $region9: #{tpu_custom_call.1} parent=5 // pred_check
        _
      $region10: #{tpu_custom_call.1} parent=5 // pred_check_branch
        %145 = sbr.rel (%p142) target = $region12
      $region11: #{tpu_custom_call.1} parent=5 // pred_region
        %s146 = ssub.s32 %s16, 1
        // Predicated region
        $region13: #{tpu_custom_call.1} parent=11 // pred_check
          %p147 = pneg %p80
        $region14: #{tpu_custom_call.1} parent=11 // pred_check_branch
          %149 = sbr.rel (%p147) target = $region16
        $region15: #{tpu_custom_call.1} parent=11 // pred_region
          %s151 = ssub.s32 1024, 1024
          %152 = vsyncadd [#allocation7], %s151
          %s153 = smul.addr %s26, 64
          %s154 = scalar_lea.hbm %s1, %s153
          %s155 = sshll.u32 [#allocation6], 4
          %s156 = int_to_ptr.vmem [resolvable:$true] %s155
          %161 = dma.hbm_to_vmem [thread:$0]  %s154, 1024, %s156, [#allocation7], 64, 64, 4
        $region16: #{tpu_custom_call.1} parent=11 // pred_fallthru
          _
        // Predicated region
        $region17: #{tpu_custom_call.1} parent=11 // pred_check
          %p162 = pneg %p106
        $region18: #{tpu_custom_call.1} parent=11 // pred_check_branch
          %164 = sbr.rel (%p162) target = $region20
        $region19: #{tpu_custom_call.1} parent=11 // pred_region
          %s165 = smul.u32 16, %s26
          %s167 = ssub.s32 1024, 1024
          %168 = vsyncadd [#allocation7], %s167
          %s169 = smul.addr %s165, 64
          %s170 = scalar_lea.hbm %s2, %s169
          %s171 = sshll.u32 [#allocation8], 4
          %s172 = int_to_ptr.vmem [resolvable:$true] %s171
          %177 = dma.hbm_to_vmem [thread:$0]  %s170, 1024, %s172, [#allocation7], 64, 64, 4
        $region20: #{tpu_custom_call.1} parent=11 // pred_fallthru
          _
      $region12: #{tpu_custom_call.1} parent=5 // pred_fallthru
        _
      %p178 = scmp.lt.s32.totalorder %s16, 2
      // Predicated region
      $region21: #{tpu_custom_call.1} parent=5 // pred_check
        %p179 = pneg %p178
      $region22: #{tpu_custom_call.1} parent=5 // pred_check_branch
        %181 = sbr.rel (%p179) target = $region24
      $region23: #{tpu_custom_call.1} parent=5 // pred_region
        // Predicated region
        $region25: #{tpu_custom_call.1} parent=23 // pred_check
          %p182 = pneg %p48
        $region26: #{tpu_custom_call.1} parent=23 // pred_check_branch
          %184 = sbr.rel (%p182) target = $region28
        $region27: #{tpu_custom_call.1} parent=23 // pred_region
          %s185 = sand.u32 %s38, 1
          %s186 = scalar_lea.sflag [#allocation4], %s185
          %s187 = sand.u32 %s38, 1
          %s188 = smul.addr %s187, 8
          %s189 = scalar_lea.vmem [#allocation3], %s188
          %s191 = ssub.s32 128, 128
          %192 = vsyncadd %s186, %s191
          %s193 = smul.addr %s23, 128
          %s194 = scalar_lea.hbm %s0, %s193
          %s196 = sshll.u32 %s189, 4
          %s197 = int_to_ptr.vmem [resolvable:$true] %s196
          %199 = dma.hbm_to_vmem [thread:$0]  %s194, 128, %s197, %s186
        $region28: #{tpu_custom_call.1} parent=23 // pred_fallthru
          _
      $region24: #{tpu_custom_call.1} parent=5 // pred_fallthru
        _
      %p200 = scmp.le.s32.totalorder 1, %s16
      %p201 = scmp.lt.s32.totalorder %s16, 3
      %p202 = pnand %p200, %p201
      %p203 = pneg %p202
      // Predicated region
      $region29: #{tpu_custom_call.1} parent=5 // pred_check
        _
      $region30: #{tpu_custom_call.1} parent=5 // pred_check_branch
        %205 = sbr.rel (%p202) target = $region32
      $region31: #{tpu_custom_call.1} parent=5 // pred_region
        %s206 = ssub.s32 %s16, 1
        %s207 = sand.u32 %s41, 1
        %s208 = scalar_lea.sflag [#allocation4], %s207
        %s209 = sand.u32 %s41, 1
        %s210 = smul.addr %s209, 8
        %s211 = scalar_lea.vmem [#allocation3], %s210
        // Predicated region
        $region33: #{tpu_custom_call.1} parent=31 // pred_check
          %p212 = pneg %p54
        $region34: #{tpu_custom_call.1} parent=31 // pred_check_branch
          %214 = sbr.rel (%p212) target = $region36
        $region35: #{tpu_custom_call.1} parent=31 // pred_region
          %215 = dma.done %s208, 128
        $region36: #{tpu_custom_call.1} parent=31 // pred_fallthru
          _
        // Predicated region
        $region37: #{tpu_custom_call.1} parent=31 // pred_check
          %p216 = pneg %p80
        $region38: #{tpu_custom_call.1} parent=31 // pred_check_branch
          %218 = sbr.rel (%p216) target = $region40
        $region39: #{tpu_custom_call.1} parent=31 // pred_region
          %219 = dma.done [#allocation7], 1024
        $region40: #{tpu_custom_call.1} parent=31 // pred_fallthru
          _
        // Predicated region
        $region41: #{tpu_custom_call.1} parent=31 // pred_check
          %p220 = pneg %p106
        $region42: #{tpu_custom_call.1} parent=31 // pred_check_branch
          %222 = sbr.rel (%p220) target = $region44
        $region43: #{tpu_custom_call.1} parent=31 // pred_region
          %223 = dma.done [#allocation7], 1024
        $region44: #{tpu_custom_call.1} parent=31 // pred_fallthru
          _
        %s224 = sand.u32 %s41, 1
        %s225 = scalar_lea.sflag [#allocation4], %s224
        %s226 = sand.u32 %s41, 1
        %s227 = smul.addr %s226, 8
        %s228 = scalar_lea.vmem [#allocation3], %s227
        %p229 = pneg %p54
        %p230 = pneg %p51
        %p231 = pneg %p80
        %p232 = pneg %p77
        %p233 = pneg %p106
        %p234 = pneg %p103
        %p235 = pneg %p132
        %p236 = pneg %p129
        %s237 = sand.u32 %s119, 1
        %s238 = scalar_lea.sflag [#allocation5], %s237
        %s239 = sand.u32 %s119, 1
        %s240 = smul.addr %s239, 8
        %s241 = scalar_lea.vmem [#allocation9], %s240
        %s242 = smul.u32 16, %s26
        %p244 = scmp.eq.s32.totalorder %s26, 0
        // Predicated region
        $region45: #{tpu_custom_call.1} parent=31 // pred_check
          %p245 = pneg %p244
        $region46: #{tpu_custom_call.1} parent=31 // pred_check_branch
          %247 = sbr.rel (%p245) target = $region48
        $region47: #{tpu_custom_call.1} parent=31 // pred_region
          %248 = vst [vmem:[#allocation2] sm:$0xff] 0.0
        $region48: #{tpu_custom_call.1} parent=31 // pred_fallthru
          _
        %v249 = vld [vmem:[%s211] sm:$0xff]
        %v250 = vpack.c.bf16 %v249, %v249
        %v251 = vld [vmem:[#allocation6] sm:$0xf]
        %v252 = vld [vmem:[#allocation6 + $0x4] sm:$0xf]
        %v253 = vld [vmem:[#allocation6 + $0x8] sm:$0xf]
        %v254 = vld [vmem:[#allocation6 + $0xc] sm:$0xf]
        %v255 = vld [vmem:[#allocation6 + $0x10] sm:$0xf]
        %v256 = vld [vmem:[#allocation6 + $0x14] sm:$0xf]
        %v257 = vld [vmem:[#allocation6 + $0x18] sm:$0xf]
        %v258 = vld [vmem:[#allocation6 + $0x1c] sm:$0xf]
        %v259 = vld [vmem:[#allocation6 + $0x20] sm:$0xf]
        %v260 = vld [vmem:[#allocation6 + $0x24] sm:$0xf]
        %v261 = vld [vmem:[#allocation6 + $0x28] sm:$0xf]
        %v262 = vld [vmem:[#allocation6 + $0x2c] sm:$0xf]
        %v263 = vld [vmem:[#allocation6 + $0x30] sm:$0xf]
        %v264 = vld [vmem:[#allocation6 + $0x34] sm:$0xf]
        %v265 = vld [vmem:[#allocation6 + $0x38] sm:$0xf]
        %v266 = vld [vmem:[#allocation6 + $0x3c] sm:$0xf]
        %v283 = vunpack.c.l.b16 %v251
        %v284 = vunpack.c.l.b16 %v252
        %v285 = vunpack.c.l.b16 %v253
        %v286 = vunpack.c.l.b16 %v254
        %v287 = vunpack.c.l.b16 %v255
        %v288 = vunpack.c.l.b16 %v256
        %v289 = vunpack.c.l.b16 %v257
        %v290 = vunpack.c.l.b16 %v258
        %v291 = vunpack.c.l.b16 %v259
        %v292 = vunpack.c.l.b16 %v260
        %v293 = vunpack.c.l.b16 %v261
        %v294 = vunpack.c.l.b16 %v262
        %v295 = vunpack.c.l.b16 %v263
        %v296 = vunpack.c.l.b16 %v264
        %v297 = vunpack.c.l.b16 %v265
        %v298 = vunpack.c.l.b16 %v266
        %v299 = vpack.c.b16 %v284, %v283
        %v300 = vpack.c.b16 %v286, %v285
        %v301 = vpack.c.b16 %v288, %v287
        %v302 = vpack.c.b16 %v290, %v289
        %v303 = vpack.c.b16 %v292, %v291
        %v304 = vpack.c.b16 %v294, %v293
        %v305 = vpack.c.b16 %v296, %v295
        %v306 = vpack.c.b16 %v298, %v297
        %315 = vmatprep.subr.bf16.mxu0 0
        %316 = vmatpush1.bf16.msra.mxu0 %v299
        %317 = vmatprep.subr.bf16.mxu0 0
        %318 = vmatpush1.bf16.msra.mxu0 %v300
        %319 = vmatprep.subr.bf16.mxu0 0
        %320 = vmatpush1.bf16.msra.mxu0 %v301
        %321 = vmatprep.subr.bf16.mxu0 0
        %322 = vmatpush1.bf16.msra.mxu0 %v302
        %323 = vmatprep.subr.bf16.mxu0 0
        %324 = vmatpush1.bf16.msra.mxu0 %v303
        %325 = vmatprep.subr.bf16.mxu0 0
        %326 = vmatpush1.bf16.msra.mxu0 %v304
        %327 = vmatprep.subr.bf16.mxu0 0
        %328 = vmatpush1.bf16.msra.mxu0 %v305
        %329 = vmatprep.subr.bf16.mxu0 0
        %330 = vmatpush1.bf16.msra.mxu0 %v306
        %331 = vmatprep.subr.bf16.mxu0 0
        %332 = vmatpush1.bf16.msra.mxu0 0
        %333 = vmatprep.subr.bf16.mxu0 0
        %334 = vmatpush1.bf16.msra.mxu0 0
        %335 = vmatprep.subr.bf16.mxu0 0
        %336 = vmatpush1.bf16.msra.mxu0 0
        %337 = vmatprep.subr.bf16.mxu0 0
        %338 = vmatpush1.bf16.msra.mxu0 0
        %339 = vmatprep.subr.bf16.mxu0 0
        %340 = vmatpush1.bf16.msra.mxu0 0
        %341 = vmatprep.subr.bf16.mxu0 0
        %342 = vmatpush1.bf16.msra.mxu0 0
        %343 = vmatprep.subr.bf16.mxu0 0
        %344 = vmatpush1.bf16.msra.mxu0 0
        %345 = vmatprep.subr.bf16.mxu0 0
        %346 = vmatpush1.bf16.msra.mxu0 0
        %347 = vmatprep.mubr.bf16.mxu0 0
        %348 = vmatmul.mubr.bf16.gmra.mrb[0].mxu0 %v250
        %v349 = vpop.f32.mrb[0].mxu0
        %v350 = vadd.f32 0.0, %v349
        %v351 = vpop.f32.mrb[0].mxu0
        %v352 = vpop.f32.mrb[0].mxu0
        %v353 = vpop.f32.mrb[0].mxu0
        %354 = vdwg.mxu0
        %vm355 = vcmp.ge.f32.partialorder %v350, 0.0
        %v356 = vmul.f32 %v350, 0.2
        %v357 = vsel %vm355, %v350, %v356
        %v358 = vld [vmem:[#allocation2] sm:$0xff]
        %v359 = vpack.c.bf16 %v357, %v357
        %v360 = vld [vmem:[#allocation8] sm:$0xf]
        %v361 = vld [vmem:[#allocation8 + $0x4] sm:$0xf]
        %v362 = vld [vmem:[#allocation8 + $0x8] sm:$0xf]
        %v363 = vld [vmem:[#allocation8 + $0xc] sm:$0xf]
        %v364 = vld [vmem:[#allocation8 + $0x10] sm:$0xf]
        %v365 = vld [vmem:[#allocation8 + $0x14] sm:$0xf]
        %v366 = vld [vmem:[#allocation8 + $0x18] sm:$0xf]
        %v367 = vld [vmem:[#allocation8 + $0x1c] sm:$0xf]
        %v368 = vld [vmem:[#allocation8 + $0x20] sm:$0xf]
        %v369 = vld [vmem:[#allocation8 + $0x24] sm:$0xf]
        %v370 = vld [vmem:[#allocation8 + $0x28] sm:$0xf]
        %v371 = vld [vmem:[#allocation8 + $0x2c] sm:$0xf]
        %v372 = vld [vmem:[#allocation8 + $0x30] sm:$0xf]
        %v373 = vld [vmem:[#allocation8 + $0x34] sm:$0xf]
        %v374 = vld [vmem:[#allocation8 + $0x38] sm:$0xf]
        %v375 = vld [vmem:[#allocation8 + $0x3c] sm:$0xf]
        %v392 = vunpack.c.l.b16 %v360
        %v393 = vunpack.c.l.b16 %v361
        %v394 = vunpack.c.l.b16 %v362
        %v395 = vunpack.c.l.b16 %v363
        %v396 = vunpack.c.l.b16 %v364
        %v397 = vunpack.c.l.b16 %v365
        %v398 = vunpack.c.l.b16 %v366
        %v399 = vunpack.c.l.b16 %v367
        %v400 = vunpack.c.l.b16 %v368
        %v401 = vunpack.c.l.b16 %v369
        %v402 = vunpack.c.l.b16 %v370
        %v403 = vunpack.c.l.b16 %v371
        %v404 = vunpack.c.l.b16 %v372
        %v405 = vunpack.c.l.b16 %v373
        %v406 = vunpack.c.l.b16 %v374
        %v407 = vunpack.c.l.b16 %v375
        %v408 = vpack.c.b16 %v393, %v392
        %v409 = vpack.c.b16 %v395, %v394
        %v410 = vpack.c.b16 %v397, %v396
        %v411 = vpack.c.b16 %v399, %v398
        %v412 = vpack.c.b16 %v401, %v400
        %v413 = vpack.c.b16 %v403, %v402
        %v414 = vpack.c.b16 %v405, %v404
        %v415 = vpack.c.b16 %v407, %v406
        %424 = vmatprep.subr.bf16.mxu0 0
        %425 = vmatpush1.bf16.msra.mxu0 %v408
        %426 = vmatprep.subr.bf16.mxu0 0
        %427 = vmatpush1.bf16.msra.mxu0 %v409
        %428 = vmatprep.subr.bf16.mxu0 0
        %429 = vmatpush1.bf16.msra.mxu0 %v410
        %430 = vmatprep.subr.bf16.mxu0 0
        %431 = vmatpush1.bf16.msra.mxu0 %v411
        %432 = vmatprep.subr.bf16.mxu0 0
        %433 = vmatpush1.bf16.msra.mxu0 %v412
        %434 = vmatprep.subr.bf16.mxu0 0
        %435 = vmatpush1.bf16.msra.mxu0 %v413
        %436 = vmatprep.subr.bf16.mxu0 0
        %437 = vmatpush1.bf16.msra.mxu0 %v414
        %438 = vmatprep.subr.bf16.mxu0 0
        %439 = vmatpush1.bf16.msra.mxu0 %v415
        %440 = vmatprep.subr.bf16.mxu0 0
        %441 = vmatpush1.bf16.msra.mxu0 0
        %442 = vmatprep.subr.bf16.mxu0 0
        %443 = vmatpush1.bf16.msra.mxu0 0
        %444 = vmatprep.subr.bf16.mxu0 0
        %445 = vmatpush1.bf16.msra.mxu0 0
        %446 = vmatprep.subr.bf16.mxu0 0
        %447 = vmatpush1.bf16.msra.mxu0 0
        %448 = vmatprep.subr.bf16.mxu0 0
        %449 = vmatpush1.bf16.msra.mxu0 0
        %450 = vmatprep.subr.bf16.mxu0 0
        %451 = vmatpush1.bf16.msra.mxu0 0
        %452 = vmatprep.subr.bf16.mxu0 0
        %453 = vmatpush1.bf16.msra.mxu0 0
        %454 = vmatprep.subr.bf16.mxu0 0
        %455 = vmatpush1.bf16.msra.mxu0 0
        %456 = vmatprep.mubr.bf16.mxu0 0
        %457 = vmatmul.mubr.bf16.gmra.mrb[0].mxu0 %v359
        %v458 = vpop.f32.mrb[0].mxu0
        %v459 = vadd.f32 0.0, %v458
        %v460 = vpop.f32.mrb[0].mxu0
        %v461 = vpop.f32.mrb[0].mxu0
        %v462 = vpop.f32.mrb[0].mxu0
        %463 = vdwg.mxu0
        %v464 = vadd.f32 %v358, %v459
        %465 = vst [vmem:[#allocation2] sm:$0xff] %v464
        // Predicated region
        $region49: #{tpu_custom_call.1} parent=31 // pred_check
          %p466 = pneg %p244
        $region50: #{tpu_custom_call.1} parent=31 // pred_check_branch
          %468 = sbr.rel (%p466) target = $region52
        $region51: #{tpu_custom_call.1} parent=31 // pred_region
          %v469 = vld [vmem:[#allocation2] sm:$0xff]
          %vm470 = vcmp.ge.f32.partialorder %v469, 0.0
          %v471 = vmul.f32 %v469, 0.2
          %v472 = vsel %vm470, %v469, %v471
          %473 = vst [vmem:[%s241] sm:$0xff] %v472
        $region52: #{tpu_custom_call.1} parent=31 // pred_fallthru
          _
        %s474 = sand.u32 %s119, 1
        %s475 = scalar_lea.sflag [#allocation5], %s474
        %s476 = sand.u32 %s119, 1
        %s477 = smul.addr %s476, 8
        %s478 = scalar_lea.vmem [#allocation9], %s477
        // Predicated region
        $region53: #{tpu_custom_call.1} parent=31 // pred_check
          %p479 = pneg %p129
        $region54: #{tpu_custom_call.1} parent=31 // pred_check_branch
          %481 = sbr.rel (%p479) target = $region56
        $region55: #{tpu_custom_call.1} parent=31 // pred_region
          %s483 = ssub.s32 128, 128
          %484 = vsyncadd %s475, %s483
          %s485 = smul.addr %s25, 128
          %s486 = scalar_lea.hbm %s3, %s485
          %s488 = sshll.u32 %s478, 4
          %s489 = int_to_ptr.vmem [resolvable:$true] %s488
          %491 = dma.vmem_to_hbm [thread:$0]  %s489, 128, %s486, %s475
        $region56: #{tpu_custom_call.1} parent=31 // pred_fallthru
          _
      $region32: #{tpu_custom_call.1} parent=5 // pred_fallthru
        _
      %p492 = scmp.le.s32.totalorder 2, %s16
      // Predicated region
      $region57: #{tpu_custom_call.1} parent=5 // pred_check
        %p493 = pneg %p492
      $region58: #{tpu_custom_call.1} parent=5 // pred_check_branch
        %495 = sbr.rel (%p493) target = $region60
      $region59: #{tpu_custom_call.1} parent=5 // pred_region
        %s496 = ssub.s32 %s16, 2
        // Predicated region
        $region61: #{tpu_custom_call.1} parent=59 // pred_check
          %p497 = pneg %p135
        $region62: #{tpu_custom_call.1} parent=59 // pred_check_branch
          %499 = sbr.rel (%p497) target = $region64
        $region63: #{tpu_custom_call.1} parent=59 // pred_region
          %s500 = sand.u32 %s120, 1
          %s501 = scalar_lea.sflag [#allocation5], %s500
          %s502 = sand.u32 %s120, 1
          %s503 = smul.addr %s502, 8
          %s504 = scalar_lea.vmem [#allocation9], %s503
          %505 = dma.done %s501, 128
        $region64: #{tpu_custom_call.1} parent=59 // pred_fallthru
          _
      $region60: #{tpu_custom_call.1} parent=5 // pred_fallthru
        _
    $region6: #{tpu_custom_call.1} parent=1 // loop_footer
      %s20 = sadd.s32 1, %s16
    $region7: #{tpu_custom_call.1} parent=1 // loop_footer_branch
      %15 = sbr.rel target = $region3
    $region8: #{tpu_custom_call.1} parent=1 // loop_exit
      _
    %506 = vsyncpa [#allocation4], 1
    %s507 = scalar_lea.sflag [#allocation4], 1
    %508 = vsyncpa %s507, 1
    %509 = vsyncpa [#allocation7], 1
    %510 = vsyncpa [#allocation5], 1
    %s511 = scalar_lea.sflag [#allocation5], 1
    %512 = vsyncpa %s511, 1

// kernel: tpu_custom_call.1
$region0: #{tpu_custom_call.1}
  #allocation0 [shape = 'u32[]', space=smem, size = 0x4, offset = 0x4, fixed_abs, tag = 'smem constant byte address 0x4 - core index']
  #allocation1 [shape = 'u32[144,128]{1,0:T(1,128)}', space=vmem, size = 0x12000, scoped, tag = 'internal scratch']
  #allocation2 [shape = 'f32[8,128]{1,0:T(8,128)}', space=vmem, size = 0x1000, scoped, tag = 'scratch operand']
  %s0 = inlined_call_operand.hbm [shape: f32[16,128], index: 0, kind: input, shape index: {}]
  %s1 = inlined_call_operand.hbm [shape: bf16[128,128], index: 1, kind: input, shape index: {}]
  %s2 = inlined_call_operand.hbm [shape: bf16[128,128], index: 2, kind: input, shape index: {}]
  %s3 = inlined_call_operand.hbm [shape: f32[16,128], index: 3, kind: output, shape index: {}]
  %s4 = sld [smem:[#allocation0]]
  $region65: #{tpu_custom_call.1} parent=0
    _
  %s6 = ssub.s32 1, %s4
  %s7 = scalar_select 0, %s6, %s4
  $region1: #{tpu_custom_call.1} parent=0
    #allocation3 [shape = 'u8[8192]{0}', space=vmem, size = 0x2000, scoped, tag = 'input window, operand 0']
    #allocation4 [shape = 's32[2]{0}', space=sflag, size = 0x8, scoped, tag = 'scoped memory for tpu_custom_call.1']
    #allocation5 [shape = 's32[2]{0}', space=sflag, size = 0x8, scoped, tag = 'scoped memory for tpu_custom_call.1']
    #allocation6 [shape = 'u8[32768]{0}', space=vmem, size = 0x8000, scoped, tag = 'input window, operand 1, single buffered']
    #allocation7 [shape = 's32[1]{0}', space=sflag, size = 0x4, scoped, tag = 'scoped memory for tpu_custom_call.1']
    #allocation8 [shape = 'u8[32768]{0}', space=vmem, size = 0x8000, scoped, tag = 'input window, operand 2, single buffered']
    #allocation9 [shape = 'u8[8192]{0}', space=vmem, size = 0x2000, scoped, tag = 'output window, operand 0']
    %8 = vsyncpa [#allocation4], 0
    %s9 = scalar_lea.sflag [#allocation4], 1
    %10 = vsyncpa %s9, 0
    %11 = vsyncpa [#allocation7], 0
    %12 = vsyncpa [#allocation5], 0
    %s13 = scalar_lea.sflag [#allocation5], 1
    %14 = vsyncpa %s13, 0
    loop: start=0, step=1, limit=4
    $region2: #{tpu_custom_call.1} parent=1 // loop_pre_header
      _
    $region3: #{tpu_custom_call.1} parent=1 // loop_header
      %s16 = sphi 0, %s20
      %p17 = scmp.ge.s32.totalorder %s16, 4
      %s23 = sphi 0, %s35
      %s24 = sphi 0, %s31
      %s25 = sphi 0, %s23
      %s26 = sphi 0, %s24
      %s27 = sphi 0, %s25
      %s28 = sphi 0, %s26
      %s38 = sphi 0, %s40
      %s41 = sphi 0, %s38
      %s42 = sphi 0, %s41
      %s58 = sphi 0, %s42
      %s64 = sphi 0, %s66
      %s67 = sphi 0, %s64
      %s68 = sphi 0, %s67
      %s84 = sphi 0, %s68
      %s90 = sphi 0, %s92
      %s93 = sphi 0, %s90
      %s94 = sphi 0, %s93
      %s110 = sphi 0, %s94
      %s116 = sphi 0, %s118
      %s119 = sphi 0, %s116
      %s120 = sphi 0, %s119
      %s136 = sphi 0, %s120
    $region4: #{tpu_custom_call.1} parent=1 // loop_header_branch
      %19 = sbr.rel (%p17) target = $region8
    $region5: #{tpu_custom_call.1} parent=1 // loop_body
      %s21 = ssub.s32 %s16, 1
      %s22 = ssub.s32 %s16, 2
      %s29 = sadd.s32 1, %s24
      %p30 = scmp.ge.s32.totalorder %s29, 1
      %s31 = scalar_select %p30, 0, %s29
      %s32 = sadd.s32 1, %s23
      %s33 = scalar_select %p30, %s32, %s23
      %p34 = scmp.ge.s32.totalorder %s33, 2
      %s35 = scalar_select %p34, 0, %s33
      %s36 = ssub.s32 %s23, %s35
      %p37 = scmp.eq.s32.totalorder %s36, 0
      %s39 = sadd.s32 %s38, 1
      %s40 = scalar_select %p37, %s38, %s39
      %p43 = pneg %p37
      %p44 = scmp.eq.s32.totalorder %s16, 1
      %p45 = por %p43, %p44
      %p46 = scmp.ne.s32.totalorder %s38, %s41
      %p47 = scmp.eq.s32.totalorder %s16, 0
      %p48 = por %p46, %p47
      %p49 = scmp.ne.s32.totalorder %s38, %s41
      %p50 = scmp.eq.s32.totalorder %s21, 1
      %p51 = por %p49, %p50
      %p52 = scmp.ne.s32.totalorder %s41, %s42
      %p53 = scmp.eq.s32.totalorder %s21, 0
      %p54 = por %p52, %p53
      %p55 = scmp.ne.s32.totalorder %s41, %s42
      %p56 = scmp.eq.s32.totalorder %s22, 1
      %p57 = por %p55, %p56
      %p59 = scmp.ne.s32.totalorder %s42, %s58
      %p60 = scmp.eq.s32.totalorder %s22, 0
      %p61 = por %p59, %p60
      %s62 = ssub.s32 %s24, %s31
      %p63 = scmp.eq.s32.totalorder %s62, 0
      %s65 = sadd.s32 %s64, 1
      %s66 = scalar_select %p63, %s64, %s65
      %p69 = pneg %p63
      %p70 = scmp.eq.s32.totalorder %s16, 1
      %p71 = por %p69, %p70
      %p72 = scmp.ne.s32.totalorder %s64, %s67
      %p73 = scmp.eq.s32.totalorder %s16, 0
      %p74 = por %p72, %p73
      %p75 = scmp.ne.s32.totalorder %s64, %s67
      %p76 = scmp.eq.s32.totalorder %s21, 1
      %p77 = por %p75, %p76
      %p78 = scmp.ne.s32.totalorder %s67, %s68
      %p79 = scmp.eq.s32.totalorder %s21, 0
      %p80 = por %p78, %p79
      %p81 = scmp.ne.s32.totalorder %s67, %s68
      %p82 = scmp.eq.s32.totalorder %s22, 1
      %p83 = por %p81, %p82
      %p85 = scmp.ne.s32.totalorder %s68, %s84
      %p86 = scmp.eq.s32.totalorder %s22, 0
      %p87 = por %p85, %p86
      %s88 = ssub.s32 %s24, %s31
      %p89 = scmp.eq.s32.totalorder %s88, 0
      %s91 = sadd.s32 %s90, 1
      %s92 = scalar_select %p89, %s90, %s91
      %p95 = pneg %p89
      %p96 = scmp.eq.s32.totalorder %s16, 1
      %p97 = por %p95, %p96
      %p98 = scmp.ne.s32.totalorder %s90, %s93
      %p99 = scmp.eq.s32.totalorder %s16, 0
      %p100 = por %p98, %p99
      %p101 = scmp.ne.s32.totalorder %s90, %s93
      %p102 = scmp.eq.s32.totalorder %s21, 1
      %p103 = por %p101, %p102
      %p104 = scmp.ne.s32.totalorder %s93, %s94
      %p105 = scmp.eq.s32.totalorder %s21, 0
      %p106 = por %p104, %p105
      %p107 = scmp.ne.s32.totalorder %s93, %s94
      %p108 = scmp.eq.s32.totalorder %s22, 1
      %p109 = por %p107, %p108
      %p111 = scmp.ne.s32.totalorder %s94, %s110
      %p112 = scmp.eq.s32.totalorder %s22, 0
      %p113 = por %p111, %p112
      %s114 = ssub.s32 %s23, %s35
      %p115 = scmp.eq.s32.totalorder %s114, 0
      %s117 = sadd.s32 %s116, 1
      %s118 = scalar_select %p115, %s116, %s117
      %p121 = pneg %p115
      %p122 = scmp.eq.s32.totalorder %s16, 1
      %p123 = por %p121, %p122
      %p124 = scmp.ne.s32.totalorder %s116, %s119
      %p125 = scmp.eq.s32.totalorder %s16, 0
      %p126 = por %p124, %p125
      %p127 = scmp.ne.s32.totalorder %s116, %s119
      %p128 = scmp.eq.s32.totalorder %s21, 1
      %p129 = por %p127, %p128
      %p130 = scmp.ne.s32.totalorder %s119, %s120
      %p131 = scmp.eq.s32.totalorder %s21, 0
      %p132 = por %p130, %p131
      %p133 = scmp.ne.s32.totalorder %s119, %s120
      %p134 = scmp.eq.s32.totalorder %s22, 1
      %p135 = por %p133, %p134
      %p137 = scmp.ne.s32.totalorder %s120, %s136
      %p138 = scmp.eq.s32.totalorder %s22, 0
      %p139 = por %p137, %p138
      %p140 = scmp.le.s32.totalorder 1, %s16
      %p141 = scmp.lt.s32.totalorder %s16, 3
      %p142 = pnand %p140, %p141
      %p143 = pneg %p142
      // Predicated region
      $region9: #{tpu_custom_call.1} parent=5 // pred_check
        _
      $region10: #{tpu_custom_call.1} parent=5 // pred_check_branch
        %145 = sbr.rel (%p142) target = $region12
      $region11: #{tpu_custom_call.1} parent=5 // pred_region
        %s146 = ssub.s32 %s16, 1
        // Predicated region
        $region13: #{tpu_custom_call.1} parent=11 // pred_check
          %p147 = pneg %p80
        $region14: #{tpu_custom_call.1} parent=11 // pred_check_branch
          %149 = sbr.rel (%p147) target = $region16
        $region15: #{tpu_custom_call.1} parent=11 // pred_region
          %s151 = ssub.s32 1024, 1024
          %152 = vsyncadd [#allocation7], %s151
          %s153 = smul.addr %s26, 64
          %s154 = scalar_lea.hbm %s1, %s153
          %s155 = sshll.u32 [#allocation6], 4
          %s156 = int_to_ptr.vmem [resolvable:$true] %s155
          %161 = dma.hbm_to_vmem [thread:$0]  %s154, 1024, %s156, [#allocation7], 64, 64, 4
        $region16: #{tpu_custom_call.1} parent=11 // pred_fallthru
          _
        // Predicated region
        $region17: #{tpu_custom_call.1} parent=11 // pred_check
          %p162 = pneg %p106
        $region18: #{tpu_custom_call.1} parent=11 // pred_check_branch
          %164 = sbr.rel (%p162) target = $region20
        $region19: #{tpu_custom_call.1} parent=11 // pred_region
          %s165 = smul.u32 16, %s26
          %s167 = ssub.s32 1024, 1024
          %168 = vsyncadd [#allocation7], %s167
          %s169 = smul.addr %s165, 64
          %s170 = scalar_lea.hbm %s2, %s169
          %s171 = sshll.u32 [#allocation8], 4
          %s172 = int_to_ptr.vmem [resolvable:$true] %s171
          %177 = dma.hbm_to_vmem [thread:$0]  %s170, 1024, %s172, [#allocation7], 64, 64, 4
        $region20: #{tpu_custom_call.1} parent=11 // pred_fallthru
          _
      $region12: #{tpu_custom_call.1} parent=5 // pred_fallthru
        _
      %p178 = scmp.lt.s32.totalorder %s16, 2
      // Predicated region
      $region21: #{tpu_custom_call.1} parent=5 // pred_check
        %p179 = pneg %p178
      $region22: #{tpu_custom_call.1} parent=5 // pred_check_branch
        %181 = sbr.rel (%p179) target = $region24
      $region23: #{tpu_custom_call.1} parent=5 // pred_region
        // Predicated region
        $region25: #{tpu_custom_call.1} parent=23 // pred_check
          %p182 = pneg %p48
        $region26: #{tpu_custom_call.1} parent=23 // pred_check_branch
          %184 = sbr.rel (%p182) target = $region28
        $region27: #{tpu_custom_call.1} parent=23 // pred_region
          %s185 = sand.u32 %s38, 1
          %s186 = scalar_lea.sflag [#allocation4], %s185
          %s187 = sand.u32 %s38, 1
          %s188 = smul.addr %s187, 8
          %s189 = scalar_lea.vmem [#allocation3], %s188
          %s191 = ssub.s32 128, 128
          %192 = vsyncadd %s186, %s191
          %s193 = smul.addr %s23, 128
          %s194 = scalar_lea.hbm %s0, %s193
          %s196 = sshll.u32 %s189, 4
          %s197 = int_to_ptr.vmem [resolvable:$true] %s196
          %199 = dma.hbm_to_vmem [thread:$0]  %s194, 128, %s197, %s186
        $region28: #{tpu_custom_call.1} parent=23 // pred_fallthru
          _
      $region24: #{tpu_custom_call.1} parent=5 // pred_fallthru
        _
      %p200 = scmp.le.s32.totalorder 1, %s16
      %p201 = scmp.lt.s32.totalorder %s16, 3
      %p202 = pnand %p200, %p201
      %p203 = pneg %p202
      // Predicated region
      $region29: #{tpu_custom_call.1} parent=5 // pred_check
        _
      $region30: #{tpu_custom_call.1} parent=5 // pred_check_branch
        %205 = sbr.rel (%p202) target = $region32
      $region31: #{tpu_custom_call.1} parent=5 // pred_region
        %s206 = ssub.s32 %s16, 1
        %s207 = sand.u32 %s41, 1
        %s208 = scalar_lea.sflag [#allocation4], %s207
        %s209 = sand.u32 %s41, 1
        %s210 = smul.addr %s209, 8
        %s211 = scalar_lea.vmem [#allocation3], %s210
        // Predicated region
        $region33: #{tpu_custom_call.1} parent=31 // pred_check
          %p212 = pneg %p54
        $region34: #{tpu_custom_call.1} parent=31 // pred_check_branch
          %214 = sbr.rel (%p212) target = $region36
        $region35: #{tpu_custom_call.1} parent=31 // pred_region
          %215 = dma.done %s208, 128
        $region36: #{tpu_custom_call.1} parent=31 // pred_fallthru
          _
        // Predicated region
        $region37: #{tpu_custom_call.1} parent=31 // pred_check
          %p216 = pneg %p80
        $region38: #{tpu_custom_call.1} parent=31 // pred_check_branch
          %218 = sbr.rel (%p216) target = $region40
        $region39: #{tpu_custom_call.1} parent=31 // pred_region
          %219 = dma.done [#allocation7], 1024
        $region40: #{tpu_custom_call.1} parent=31 // pred_fallthru
          _
        // Predicated region
        $region41: #{tpu_custom_call.1} parent=31 // pred_check
          %p220 = pneg %p106
        $region42: #{tpu_custom_call.1} parent=31 // pred_check_branch
          %222 = sbr.rel (%p220) target = $region44
        $region43: #{tpu_custom_call.1} parent=31 // pred_region
          %223 = dma.done [#allocation7], 1024
        $region44: #{tpu_custom_call.1} parent=31 // pred_fallthru
          _
        %s224 = sand.u32 %s41, 1
        %s225 = scalar_lea.sflag [#allocation4], %s224
        %s226 = sand.u32 %s41, 1
        %s227 = smul.addr %s226, 8
        %s228 = scalar_lea.vmem [#allocation3], %s227
        %p229 = pneg %p54
        %p230 = pneg %p51
        %p231 = pneg %p80
        %p232 = pneg %p77
        %p233 = pneg %p106
        %p234 = pneg %p103
        %p235 = pneg %p132
        %p236 = pneg %p129
        %s237 = sand.u32 %s119, 1
        %s238 = scalar_lea.sflag [#allocation5], %s237
        %s239 = sand.u32 %s119, 1
        %s240 = smul.addr %s239, 8
        %s241 = scalar_lea.vmem [#allocation9], %s240
        %s242 = smul.u32 16, %s26
        %p244 = scmp.eq.s32.totalorder %s26, 0
        // Predicated region
        $region45: #{tpu_custom_call.1} parent=31 // pred_check
          %p245 = pneg %p244
        $region46: #{tpu_custom_call.1} parent=31 // pred_check_branch
          %247 = sbr.rel (%p245) target = $region48
        $region47: #{tpu_custom_call.1} parent=31 // pred_region
          %248 = vst [vmem:[#allocation2] sm:$0xff] 0.0
        $region48: #{tpu_custom_call.1} parent=31 // pred_fallthru
          _
        %v249 = vld [vmem:[%s211] sm:$0xff]
        %v250 = vpack.c.bf16 %v249, %v249
        %v251 = vld [vmem:[#allocation6] sm:$0xf]
        %v252 = vld [vmem:[#allocation6 + $0x4] sm:$0xf]
        %v253 = vld [vmem:[#allocation6 + $0x8] sm:$0xf]
        %v254 = vld [vmem:[#allocation6 + $0xc] sm:$0xf]
        %v255 = vld [vmem:[#allocation6 + $0x10] sm:$0xf]
        %v256 = vld [vmem:[#allocation6 + $0x14] sm:$0xf]
        %v257 = vld [vmem:[#allocation6 + $0x18] sm:$0xf]
        %v258 = vld [vmem:[#allocation6 + $0x1c] sm:$0xf]
        %v259 = vld [vmem:[#allocation6 + $0x20] sm:$0xf]
        %v260 = vld [vmem:[#allocation6 + $0x24] sm:$0xf]
        %v261 = vld [vmem:[#allocation6 + $0x28] sm:$0xf]
        %v262 = vld [vmem:[#allocation6 + $0x2c] sm:$0xf]
        %v263 = vld [vmem:[#allocation6 + $0x30] sm:$0xf]
        %v264 = vld [vmem:[#allocation6 + $0x34] sm:$0xf]
        %v265 = vld [vmem:[#allocation6 + $0x38] sm:$0xf]
        %v266 = vld [vmem:[#allocation6 + $0x3c] sm:$0xf]
        %v283 = vunpack.c.l.b16 %v251
        %v284 = vunpack.c.l.b16 %v252
        %v285 = vunpack.c.l.b16 %v253
        %v286 = vunpack.c.l.b16 %v254
        %v287 = vunpack.c.l.b16 %v255
        %v288 = vunpack.c.l.b16 %v256
        %v289 = vunpack.c.l.b16 %v257
        %v290 = vunpack.c.l.b16 %v258
        %v291 = vunpack.c.l.b16 %v259
        %v292 = vunpack.c.l.b16 %v260
        %v293 = vunpack.c.l.b16 %v261
        %v294 = vunpack.c.l.b16 %v262
        %v295 = vunpack.c.l.b16 %v263
        %v296 = vunpack.c.l.b16 %v264
        %v297 = vunpack.c.l.b16 %v265
        %v298 = vunpack.c.l.b16 %v266
        %v299 = vpack.c.b16 %v284, %v283
        %v300 = vpack.c.b16 %v286, %v285
        %v301 = vpack.c.b16 %v288, %v287
        %v302 = vpack.c.b16 %v290, %v289
        %v303 = vpack.c.b16 %v292, %v291
        %v304 = vpack.c.b16 %v294, %v293
        %v305 = vpack.c.b16 %v296, %v295
        %v306 = vpack.c.b16 %v298, %v297
        %315 = vmatprep.subr.bf16.mxu0 0
        %316 = vmatpush1.bf16.msra.mxu0 %v299
        %317 = vmatprep.subr.bf16.mxu0 0
        %318 = vmatpush1.bf16.msra.mxu0 %v300
        %319 = vmatprep.subr.bf16.mxu0 0
        %320 = vmatpush1.bf16.msra.mxu0 %v301
        %321 = vmatprep.subr.bf16.mxu0 0
        %322 = vmatpush1.bf16.msra.mxu0 %v302
        %323 = vmatprep.subr.bf16.mxu0 0
        %324 = vmatpush1.bf16.msra.mxu0 %v303
        %325 = vmatprep.subr.bf16.mxu0 0
        %326 = vmatpush1.bf16.msra.mxu0 %v304
        %327 = vmatprep.subr.bf16.mxu0 0
        %328 = vmatpush1.bf16.msra.mxu0 %v305
        %329 = vmatprep.subr.bf16.mxu0 0
        %330 = vmatpush1.bf16.msra.mxu0 %v306
        %331 = vmatprep.subr.bf16.mxu0 0
        %332 = vmatpush1.bf16.msra.mxu0 0
        %333 = vmatprep.subr.bf16.mxu0 0
        %334 = vmatpush1.bf16.msra.mxu0 0
        %335 = vmatprep.subr.bf16.mxu0 0
        %336 = vmatpush1.bf16.msra.mxu0 0
        %337 = vmatprep.subr.bf16.mxu0 0
        %338 = vmatpush1.bf16.msra.mxu0 0
        %339 = vmatprep.subr.bf16.mxu0 0
        %340 = vmatpush1.bf16.msra.mxu0 0
        %341 = vmatprep.subr.bf16.mxu0 0
        %342 = vmatpush1.bf16.msra.mxu0 0
        %343 = vmatprep.subr.bf16.mxu0 0
        %344 = vmatpush1.bf16.msra.mxu0 0
        %345 = vmatprep.subr.bf16.mxu0 0
        %346 = vmatpush1.bf16.msra.mxu0 0
        %347 = vmatprep.mubr.bf16.mxu0 0
        %348 = vmatmul.mubr.bf16.gmra.mrb[0].mxu0 %v250
        %v349 = vpop.f32.mrb[0].mxu0
        %v350 = vadd.f32 0.0, %v349
        %v351 = vpop.f32.mrb[0].mxu0
        %v352 = vpop.f32.mrb[0].mxu0
        %v353 = vpop.f32.mrb[0].mxu0
        %354 = vdwg.mxu0
        %vm355 = vcmp.ge.f32.partialorder %v350, 0.0
        %v356 = vmul.f32 %v350, 0.2
        %v357 = vsel %vm355, %v350, %v356
        %v358 = vld [vmem:[#allocation2] sm:$0xff]
        %v359 = vpack.c.bf16 %v357, %v357
        %v360 = vld [vmem:[#allocation8] sm:$0xf]
        %v361 = vld [vmem:[#allocation8 + $0x4] sm:$0xf]
        %v362 = vld [vmem:[#allocation8 + $0x8] sm:$0xf]
        %v363 = vld [vmem:[#allocation8 + $0xc] sm:$0xf]
        %v364 = vld [vmem:[#allocation8 + $0x10] sm:$0xf]
        %v365 = vld [vmem:[#allocation8 + $0x14] sm:$0xf]
        %v366 = vld [vmem:[#allocation8 + $0x18] sm:$0xf]
        %v367 = vld [vmem:[#allocation8 + $0x1c] sm:$0xf]
        %v368 = vld [vmem:[#allocation8 + $0x20] sm:$0xf]
        %v369 = vld [vmem:[#allocation8 + $0x24] sm:$0xf]
        %v370 = vld [vmem:[#allocation8 + $0x28] sm:$0xf]
        %v371 = vld [vmem:[#allocation8 + $0x2c] sm:$0xf]
        %v372 = vld [vmem:[#allocation8 + $0x30] sm:$0xf]
        %v373 = vld [vmem:[#allocation8 + $0x34] sm:$0xf]
        %v374 = vld [vmem:[#allocation8 + $0x38] sm:$0xf]
        %v375 = vld [vmem:[#allocation8 + $0x3c] sm:$0xf]
        %v392 = vunpack.c.l.b16 %v360
        %v393 = vunpack.c.l.b16 %v361
        %v394 = vunpack.c.l.b16 %v362
        %v395 = vunpack.c.l.b16 %v363
        %v396 = vunpack.c.l.b16 %v364
        %v397 = vunpack.c.l.b16 %v365
        %v398 = vunpack.c.l.b16 %v366
        %v399 = vunpack.c.l.b16 %v367
        %v400 = vunpack.c.l.b16 %v368
        %v401 = vunpack.c.l.b16 %v369
        %v402 = vunpack.c.l.b16 %v370
        %v403 = vunpack.c.l.b16 %v371
        %v404 = vunpack.c.l.b16 %v372
        %v405 = vunpack.c.l.b16 %v373
        %v406 = vunpack.c.l.b16 %v374
        %v407 = vunpack.c.l.b16 %v375
        %v408 = vpack.c.b16 %v393, %v392
        %v409 = vpack.c.b16 %v395, %v394
        %v410 = vpack.c.b16 %v397, %v396
        %v411 = vpack.c.b16 %v399, %v398
        %v412 = vpack.c.b16 %v401, %v400
        %v413 = vpack.c.b16 %v403, %v402
        %v414 = vpack.c.b16 %v405, %v404
        %v415 = vpack.c.b16 %v407, %v406
        %424 = vmatprep.subr.bf16.mxu0 0
        %425 = vmatpush1.bf16.msra.mxu0 %v408
        %426 = vmatprep.subr.bf16.mxu0 0
        %427 = vmatpush1.bf16.msra.mxu0 %v409
        %428 = vmatprep.subr.bf16.mxu0 0
        %429 = vmatpush1.bf16.msra.mxu0 %v410
        %430 = vmatprep.subr.bf16.mxu0 0
        %431 = vmatpush1.bf16.msra.mxu0 %v411
        %432 = vmatprep.subr.bf16.mxu0 0
        %433 = vmatpush1.bf16.msra.mxu0 %v412
        %434 = vmatprep.subr.bf16.mxu0 0
        %435 = vmatpush1.bf16.msra.mxu0 %v413
        %436 = vmatprep.subr.bf16.mxu0 0
        %437 = vmatpush1.bf16.msra.mxu0 %v414
        %438 = vmatprep.subr.bf16.mxu0 0
        %439 = vmatpush1.bf16.msra.mxu0 %v415
        %440 = vmatprep.subr.bf16.mxu0 0
        %441 = vmatpush1.bf16.msra.mxu0 0
        %442 = vmatprep.subr.bf16.mxu0 0
        %443 = vmatpush1.bf16.msra.mxu0 0
        %444 = vmatprep.subr.bf16.mxu0 0
        %445 = vmatpush1.bf16.msra.mxu0 0
        %446 = vmatprep.subr.bf16.mxu0 0
        %447 = vmatpush1.bf16.msra.mxu0 0
        %448 = vmatprep.subr.bf16.mxu0 0
        %449 = vmatpush1.bf16.msra.mxu0 0
        %450 = vmatprep.subr.bf16.mxu0 0
        %451 = vmatpush1.bf16.msra.mxu0 0
        %452 = vmatprep.subr.bf16.mxu0 0
        %453 = vmatpush1.bf16.msra.mxu0 0
        %454 = vmatprep.subr.bf16.mxu0 0
        %455 = vmatpush1.bf16.msra.mxu0 0
        %456 = vmatprep.mubr.bf16.mxu0 0
        %457 = vmatmul.mubr.bf16.gmra.mrb[0].mxu0 %v359
        %v458 = vpop.f32.mrb[0].mxu0
        %v459 = vadd.f32 0.0, %v458
        %v460 = vpop.f32.mrb[0].mxu0
        %v461 = vpop.f32.mrb[0].mxu0
        %v462 = vpop.f32.mrb[0].mxu0
        %463 = vdwg.mxu0
        %v464 = vadd.f32 %v358, %v459
        %465 = vst [vmem:[#allocation2] sm:$0xff] %v464
        // Predicated region
        $region49: #{tpu_custom_call.1} parent=31 // pred_check
          %p466 = pneg %p244
        $region50: #{tpu_custom_call.1} parent=31 // pred_check_branch
          %468 = sbr.rel (%p466) target = $region52
        $region51: #{tpu_custom_call.1} parent=31 // pred_region
          %v469 = vld [vmem:[#allocation2] sm:$0xff]
          %vm470 = vcmp.ge.f32.partialorder %v469, 0.0
          %v471 = vmul.f32 %v469, 0.2
          %v472 = vsel %vm470, %v469, %v471
          %473 = vst [vmem:[%s241] sm:$0xff] %v472
        $region52: #{tpu_custom_call.1} parent=31 // pred_fallthru
          _
        %s474 = sand.u32 %s119, 1
        %s475 = scalar_lea.sflag [#allocation5], %s474
        %s476 = sand.u32 %s119, 1
        %s477 = smul.addr %s476, 8
        %s478 = scalar_lea.vmem [#allocation9], %s477
        // Predicated region
        $region53: #{tpu_custom_call.1} parent=31 // pred_check
          %p479 = pneg %p129
        $region54: #{tpu_custom_call.1} parent=31 // pred_check_branch
          %481 = sbr.rel (%p479) target = $region56
        $region55: #{tpu_custom_call.1} parent=31 // pred_region
          %s483 = ssub.s32 128, 128
          %484 = vsyncadd %s475, %s483
          %s485 = smul.addr %s25, 128
          %s486 = scalar_lea.hbm %s3, %s485
          %s488 = sshll.u32 %s478, 4
          %s489 = int_to_ptr.vmem [resolvable:$true] %s488
          %491 = dma.vmem_to_hbm [thread:$0]  %s489, 128, %s486, %s475
        $region56: #{tpu_custom_call.1} parent=31 // pred_fallthru
          _
      $region32: #{tpu_custom_call.1} parent=5 // pred_fallthru
        _
      %p492 = scmp.le.s32.totalorder 2, %s16
      // Predicated region
      $region57: #{tpu_custom_call.1} parent=5 // pred_check
        %p493 = pneg %p492
      $region58: #{tpu_custom_call.1} parent=5 // pred_check_branch
        %495 = sbr.rel (%p493) target = $region60
      $region59: #{tpu_custom_call.1} parent=5 // pred_region
        %s496 = ssub.s32 %s16, 2
        // Predicated region
        $region61: #{tpu_custom_call.1} parent=59 // pred_check
          %p497 = pneg %p135
        $region62: #{tpu_custom_call.1} parent=59 // pred_check_branch
          %499 = sbr.rel (%p497) target = $region64
        $region63: #{tpu_custom_call.1} parent=59 // pred_region
          %s500 = sand.u32 %s120, 1
          %s501 = scalar_lea.sflag [#allocation5], %s500
          %s502 = sand.u32 %s120, 1
          %s503 = smul.addr %s502, 8
          %s504 = scalar_lea.vmem [#allocation9], %s503
          %505 = dma.done %s501, 128
        $region64: #{tpu_custom_call.1} parent=59 // pred_fallthru
          _
      $region60: #{tpu_custom_call.1} parent=5 // pred_fallthru
        _
    $region6: #{tpu_custom_call.1} parent=1 // loop_footer
      %s20 = sadd.s32 1, %s16
    $region7: #{tpu_custom_call.1} parent=1 // loop_footer_branch
      %15 = sbr.rel target = $region3
    $region8: #{tpu_custom_call.1} parent=1 // loop_exit
      _
    %506 = vsyncpa [#allocation4], 1
    %s507 = scalar_lea.sflag [#allocation4], 1
    %508 = vsyncpa %s507, 1
    %509 = vsyncpa [#allocation7], 1
    %510 = vsyncpa [#allocation5], 1
    %s511 = scalar_lea.sflag [#allocation5], 1
    %512 = vsyncpa %s511, 1

</llo_original>
